<compile_context>
chip_gen: v7x
topology: tpu7x:2x2x1
jax: 0.10.0
libtpu: 0.0.40
codegen_flags: <defaults>
</compile_context>

<pallas_src>
import jax
import jax.numpy as jnp
from jax.experimental import pallas as pl
from jax.experimental.pallas import tpu as pltpu


def _round_up(x, m):
    return ((x + m - 1) // m) * m


def _concat_linear_kernel(xu_ref, sk_ref, wu_ref, ws_ref, b_ref, o_ref):
    """One (TM, C_out_p) row tile: out = x_up @ W_up + skip @ W_skip + bias.

    The channel concat of the PyTorch module is folded into the weight split,
    so no lane-axis concatenate / relayout happens inside the kernel.  Both
    dots accumulate in f32 on the MXU regardless of operand dtype.
    """
    acc = jnp.dot(xu_ref[...], wu_ref[...], preferred_element_type=jnp.float32)
    acc = acc + jnp.dot(sk_ref[...], ws_ref[...], preferred_element_type=jnp.float32)
    o_ref[...] = (acc + b_ref[...]).astype(o_ref.dtype)


def prepare_concat_linear_params(weight, bias, x_up_channels, *, param_dtype=None):
    """One-time parameter prep — call once, NOT per forward.

    weight : (C_out, C_in) PyTorch nn.Linear layout, C_in = C_up + C_skip
    bias   : (C_out,)
    Returns (w_up, w_skip, bias2, c_out):
      w_up   : (C_up,   C_out_padded)  weight dtype (no forced f32)
      w_skip : (C_skip, C_out_padded)
      bias2  : (1, C_out_padded) float32 (added onto the f32 accumulator)
    C_out is zero-padded up to a multiple of 128 so kernel stores are lane-dense.
    """
    c_out, c_in = weight.shape
    c_up = x_up_channels
    c_skip = c_in - c_up
    assert c_skip > 0, "skip_channels must be positive"
    if param_dtype is None:
        param_dtype = weight.dtype

    c_out_p = _round_up(c_out, 128)
    pad = c_out_p - c_out

    w_t = weight.T.astype(param_dtype)              # (C_in, C_out)
    if pad:
        w_t = jnp.pad(w_t, ((0, 0), (0, pad)))
    w_up = w_t[:c_up]                               # (C_up,   C_out_p)
    w_skip = w_t[c_up:]                             # (C_skip, C_out_p)

    b2 = bias.astype(jnp.float32).reshape(1, c_out)
    if pad:
        b2 = jnp.pad(b2, ((0, 0), (0, pad)))
    return w_up, w_skip, b2, c_out


def concat_linear_forward(x_up, skip_val, w_up, w_skip, bias2, c_out, *, tm=512):
    """Apply the fused concat+linear with pre-prepared (split/padded) params."""
    B, N, c_up = x_up.shape
    _, _, c_skip = skip_val.shape
    c_out_p = w_up.shape[1]
    out_dtype = x_up.dtype
    in_bytes = jnp.dtype(x_up.dtype).itemsize
    w_bytes = jnp.dtype(w_up.dtype).itemsize
    out_bytes = jnp.dtype(out_dtype).itemsize

    M = B * N

    # Row tile: multiple of 8 (sublane), as large as the VMEM budget allows,
    # clamped for small problems.
    tm = max(8, min(_round_up(tm, 8), _round_up(M, 8)))

    def vmem_estimate(t):
        tiles = t * (c_up * in_bytes + c_skip * in_bytes + c_out_p * out_bytes)
        weights = (c_up + c_skip) * c_out_p * w_bytes + c_out_p * 4
        return 2 * (tiles + weights)          # conservative: 2x double-buffering

    # Stay comfortably under the default scoped-VMEM limit on every generation
    # (v5e 16 MiB / v6e 32 MiB / v7x 32 MiB scoped of 64 MiB physical).
    while tm > 8 and vmem_estimate(tm) > 12 * 1024 * 1024:
        tm = max(8, _round_up(tm // 2, 8))

    M_p = _round_up(M, tm)
    grid = M_p // tm

    xu2 = x_up.reshape(M, c_up)
    sk2 = skip_val.reshape(M, c_skip)
    if M_p != M:
        xu2 = jnp.pad(xu2, ((0, M_p - M), (0, 0)))
        sk2 = jnp.pad(sk2, ((0, M_p - M), (0, 0)))

    cost = pl.CostEstimate(
        flops=2 * M_p * (c_up + c_skip) * c_out_p,
        transcendentals=0,
        bytes_accessed=(M_p * c_up * in_bytes
                        + M_p * c_skip * in_bytes
                        + (c_up + c_skip) * c_out_p * w_bytes
                        + c_out_p * 4
                        + M_p * c_out_p * out_bytes),
    )

    out2 = pl.pallas_call(
        _concat_linear_kernel,
        out_shape=jax.ShapeDtypeStruct((M_p, c_out_p), out_dtype),
        grid_spec=pltpu.PrefetchScalarGridSpec(
            num_scalar_prefetch=0,
            grid=(grid,),
            in_specs=[
                pl.BlockSpec((tm, c_up), lambda i: (i, 0)),
                pl.BlockSpec((tm, c_skip), lambda i: (i, 0)),
                pl.BlockSpec((c_up, c_out_p), lambda i: (0, 0)),
                pl.BlockSpec((c_skip, c_out_p), lambda i: (0, 0)),
                pl.BlockSpec((1, c_out_p), lambda i: (0, 0)),
            ],
            out_specs=pl.BlockSpec((tm, c_out_p), lambda i: (i, 0)),
        ),
        compiler_params=pltpu.CompilerParams(
            dimension_semantics=("parallel",)),
        cost_estimate=cost,
    )(xu2, sk2, w_up, w_skip, bias2)

    out2 = out2[:M, :c_out]                  # drop row + channel padding
    return out2.reshape(B, N, c_out)


def concat_linear_block(x, x_up, skip_val, weight, bias, *, tm=512):
    """Convenience wrapper matching ConcatLinearBlock.forward(x, x_up, skip_val).

    For production use, call prepare_concat_linear_params once and reuse the
    prepared params with concat_linear_forward to avoid per-call weight prep.
    """
    del x  # the PyTorch forward ignores its first argument
    c_up = x_up.shape[2]
    w_up, w_skip, b2, c_out = prepare_concat_linear_params(weight, bias, c_up)
    return concat_linear_forward(x_up, skip_val, w_up, w_skip, b2, c_out, tm=tm)


if __name__ == "__main__":
    # Module config (small, consistent with the forward semantics):
    #   x_up_channels + skip_channels == x_channels (Linear in_features)
    B, N = 2, 16
    x_up_channels = 4
    skip_channels = 4
    x_channels = x_up_channels + skip_channels      # Linear in_features = 8
    level_out_channels = 32                         # Linear out_features

    key = jax.random.PRNGKey(0)
    k_x, k_xu, k_sk, k_w, k_b = jax.random.split(key, 5)

    # Deterministic synthetic params (nn.Linear(x_channels, level_out_channels)).
    bound = 1.0 / (x_channels ** 0.5)
    weight = jax.random.uniform(
        k_w, (level_out_channels, x_channels), jnp.float32, -bound, bound)
    bias = jax.random.uniform(
        k_b, (level_out_channels,), jnp.float32, -bound, bound)

    # Inputs (channels-last: dim 2 is the channel dim the PyTorch module concats).
    x = jax.random.normal(k_x, (B, N, x_channels), jnp.float32)          # unused by forward
    x_up = jax.random.normal(k_xu, (B, N, x_up_channels), jnp.float32)
    skip_val = jax.random.normal(k_sk, (B, N, skip_channels), jnp.float32)

    out = concat_linear_block(x, x_up, skip_val, weight, bias)
    out = jax.block_until_ready(out)

    # Pure-JAX reference check of forward semantics.
    ref = jnp.concatenate([x_up, skip_val], axis=2) @ weight.T + bias
    assert out.shape == (B, N, level_out_channels)
    assert out.dtype == x_up.dtype
    assert jnp.allclose(out, ref, atol=1e-5, rtol=1e-5)

    print("KERNEL_OK")
</pallas_src>

<mosaic_0001>
module attributes {stable_mosaic.version = 11 : i64} {
  func.func @_concat_linear_kernel(%arg0: i32, %arg1: memref<32x4xf32, #tpu.memory_space<vmem>>, %arg2: memref<32x4xf32, #tpu.memory_space<vmem>>, %arg3: memref<4x128xf32, #tpu.memory_space<vmem>>, %arg4: memref<4x128xf32, #tpu.memory_space<vmem>>, %arg5: memref<1x128xf32, #tpu.memory_space<vmem>>, %arg6: memref<32x128xf32, #tpu.memory_space<vmem>>) attributes {dimension_semantics = [#tpu.dimension_semantics<parallel>], iteration_bounds = array<i64: 1>, scalar_prefetch = 0 : i64, scratch_operands = 0 : i64, tpu.core_type = #tpu.core_type<tc>, window_params = [{transform_indices = @transform_0, window_bounds = array<i64: 32, 4>}, {transform_indices = @transform_1, window_bounds = array<i64: 32, 4>}, {pipeline_mode = #tpu.pipeline_mode<synchronous>, transform_indices = @transform_2, window_bounds = array<i64: 4, 128>}, {pipeline_mode = #tpu.pipeline_mode<synchronous>, transform_indices = @transform_3, window_bounds = array<i64: 4, 128>}, {pipeline_mode = #tpu.pipeline_mode<synchronous>, transform_indices = @transform_4, window_bounds = array<i64: 1, 128>}, {transform_indices = @transform_5, window_bounds = array<i64: 32, 128>}]} {
    %c0 = arith.constant 0 : index
    %c0_0 = arith.constant 0 : index
    %0 = vector.load %arg1[%c0, %c0_0] : memref<32x4xf32, #tpu.memory_space<vmem>>, vector<32x4xf32>
    %c0_1 = arith.constant 0 : index
    %c0_2 = arith.constant 0 : index
    %1 = vector.load %arg3[%c0_1, %c0_2] : memref<4x128xf32, #tpu.memory_space<vmem>>, vector<4x128xf32>
    %cst = arith.constant dense<0.000000e+00> : vector<32x128xf32>
    %2 = tpu.matmul %0, %1, %cst {dimension_numbers = #tpu.dot_dimension_numbers<[1], [0], [0], [1], [0, 0, 1, 1], [], []>} : vector<32x4xf32>, vector<4x128xf32>, vector<32x128xf32> -> vector<32x128xf32>
    %c0_3 = arith.constant 0 : index
    %c0_4 = arith.constant 0 : index
    %3 = vector.load %arg2[%c0_3, %c0_4] : memref<32x4xf32, #tpu.memory_space<vmem>>, vector<32x4xf32>
    %c0_5 = arith.constant 0 : index
    %c0_6 = arith.constant 0 : index
    %4 = vector.load %arg4[%c0_5, %c0_6] : memref<4x128xf32, #tpu.memory_space<vmem>>, vector<4x128xf32>
    %cst_7 = arith.constant dense<0.000000e+00> : vector<32x128xf32>
    %5 = tpu.matmul %3, %4, %cst_7 {dimension_numbers = #tpu.dot_dimension_numbers<[1], [0], [0], [1], [0, 0, 1, 1], [], []>} : vector<32x4xf32>, vector<4x128xf32>, vector<32x128xf32> -> vector<32x128xf32>
    %6 = arith.addf %2, %5 : vector<32x128xf32>
    %c0_8 = arith.constant 0 : index
    %c0_9 = arith.constant 0 : index
    %7 = vector.load %arg5[%c0_8, %c0_9] : memref<1x128xf32, #tpu.memory_space<vmem>>, vector<1x128xf32>
    %8 = vector.broadcast %7 : vector<1x128xf32> to vector<32x128xf32>
    %9 = arith.addf %6, %8 : vector<32x128xf32>
    %c0_10 = arith.constant 0 : index
    %c0_11 = arith.constant 0 : index
    %10 = vector.load %arg6[%c0_10, %c0_11] : memref<32x128xf32, #tpu.memory_space<vmem>>, vector<32x128xf32>
    tpu.vector_store %arg6[%c0_10, %c0_11], %9 {strides = array<i32>} : memref<32x128xf32, #tpu.memory_space<vmem>>, vector<32x128xf32>,
    return
  }
  func.func @transform_0(%arg0: i32) -> (i32, i32) {
    %c0_i32 = arith.constant 0 : i32
    %c0_i32_0 = arith.constant 0 : i32
    return %arg0, %c0_i32 : i32, i32
  }
  func.func @transform_1(%arg0: i32) -> (i32, i32) {
    %c0_i32 = arith.constant 0 : i32
    %c0_i32_0 = arith.constant 0 : i32
    return %arg0, %c0_i32 : i32, i32
  }
  func.func @transform_2(%arg0: i32) -> (i32, i32) {
    %c0_i32 = arith.constant 0 : i32
    %c0_i32_0 = arith.constant 0 : i32
    %c0_i32_1 = arith.constant 0 : i32
    return %c0_i32, %c0_i32_0 : i32, i32
  }
  func.func @transform_3(%arg0: i32) -> (i32, i32) {
    %c0_i32 = arith.constant 0 : i32
    %c0_i32_0 = arith.constant 0 : i32
    %c0_i32_1 = arith.constant 0 : i32
    return %c0_i32, %c0_i32_0 : i32, i32
  }
  func.func @transform_4(%arg0: i32) -> (i32, i32) {
    %c0_i32 = arith.constant 0 : i32
    %c0_i32_0 = arith.constant 0 : i32
    %c0_i32_1 = arith.constant 0 : i32
    return %c0_i32, %c0_i32_0 : i32, i32
  }
  func.func @transform_5(%arg0: i32) -> (i32, i32) {
    %c0_i32 = arith.constant 0 : i32
    %c0_i32_0 = arith.constant 0 : i32
    return %arg0, %c0_i32 : i32, i32
  }
}

</mosaic_0001>

<llo_original>
// kernel: tpu_custom_call.1
$region0: #{tpu_custom_call.1}
  #allocation0 [shape = 'u32[]', space=smem, size = 0x4, offset = 0x4, fixed_abs, tag = 'smem constant byte address 0x4 - core index']
  #allocation1 [shape = 'u32[144,128]{1,0:T(1,128)}', space=vmem, size = 0x12000, scoped, tag = 'internal scratch']
  %s0 = inlined_call_operand.vmem [shape: f32[32,4], index: 0, kind: input, shape index: {}]
  %s1 = inlined_call_operand.vmem [shape: f32[32,4], index: 1, kind: input, shape index: {}]
  %s2 = inlined_call_operand.vmem [shape: f32[4,128], index: 2, kind: input, shape index: {}]
  %s3 = inlined_call_operand.vmem [shape: f32[4,128], index: 3, kind: input, shape index: {}]
  %s4 = inlined_call_operand.vmem [shape: f32[1,128], index: 4, kind: input, shape index: {}]
  %s5 = inlined_call_operand.hbm [shape: f32[32,128], index: 5, kind: output, shape index: {}]
  %s6 = sld [smem:[#allocation0]]
  $region30: #{tpu_custom_call.1} parent=0
    _
  %s8 = ssub.s32 1, %s6
  %s9 = scalar_select 0, %s8, %s6
  $region1: #{tpu_custom_call.1} parent=0
    #allocation2 [shape = 'u8[16384]{0}', space=vmem, size = 0x4000, scoped, tag = 'output window, operand 0, single buffered']
    #allocation3 [shape = 's32[1]{0}', space=sflag, size = 0x4, scoped, tag = 'scoped memory for tpu_custom_call.1']
    %10 = vsyncpa [#allocation3], 0
    // Predicated region
    $region2: #{tpu_custom_call.1} parent=1 // pred_check
      _
    $region3: #{tpu_custom_call.1} parent=1 // pred_check_branch
      %12 = sbr.rel (0) target = $region5
    $region4: #{tpu_custom_call.1} parent=1 // pred_region
      _
    $region5: #{tpu_custom_call.1} parent=1 // pred_fallthru
      _
    // Predicated region
    $region6: #{tpu_custom_call.1} parent=1 // pred_check
      _
    $region7: #{tpu_custom_call.1} parent=1 // pred_check_branch
      %14 = sbr.rel (0) target = $region9
    $region8: #{tpu_custom_call.1} parent=1 // pred_region
      _
    $region9: #{tpu_custom_call.1} parent=1 // pred_fallthru
      _
    // Predicated region
    $region10: #{tpu_custom_call.1} parent=1 // pred_check
      _
    $region11: #{tpu_custom_call.1} parent=1 // pred_check_branch
      %16 = sbr.rel (0) target = $region13
    $region12: #{tpu_custom_call.1} parent=1 // pred_region
      _
    $region13: #{tpu_custom_call.1} parent=1 // pred_fallthru
      _
    // Predicated region
    $region14: #{tpu_custom_call.1} parent=1 // pred_check
      _
    $region15: #{tpu_custom_call.1} parent=1 // pred_check_branch
      %18 = sbr.rel (0) target = $region17
    $region16: #{tpu_custom_call.1} parent=1 // pred_region
      _
    $region17: #{tpu_custom_call.1} parent=1 // pred_fallthru
      _
    // Predicated region
    $region18: #{tpu_custom_call.1} parent=1 // pred_check
      _
    $region19: #{tpu_custom_call.1} parent=1 // pred_check_branch
      %20 = sbr.rel (0) target = $region21
    $region20: #{tpu_custom_call.1} parent=1 // pred_region
      _
    $region21: #{tpu_custom_call.1} parent=1 // pred_fallthru
      _
    %v21 = vld [vmem:[%s0] sm:$0xff]
    %v22 = vld [vmem:[%s0 + $0x8] sm:$0xff]
    %v23 = vld [vmem:[%s0 + $0x10] sm:$0xff]
    %v24 = vld [vmem:[%s0 + $0x18] sm:$0xff]
    %v25 = vld [vmem:[%s2] sm:$0xf]
    %v26 = vld [vmem:[%s1] sm:$0xff]
    %v27 = vld [vmem:[%s1 + $0x8] sm:$0xff]
    %v28 = vld [vmem:[%s1 + $0x10] sm:$0xff]
    %v29 = vld [vmem:[%s1 + $0x18] sm:$0xff]
    %v30 = vld [vmem:[%s3] sm:$0xf]
    %vm31 = vcmask 31744
    %v33 = vsel %vm31, %v26, 0
    %v36 = vsel %vm31, %v27, 0
    %v39 = vsel %vm31, %v28, 0
    %v42 = vsel %vm31, %v29, 0
    %vm44 = vcmask 1043456
    %v46 = vsel %vm44, %v30, 0
    %48 = vmatprep.subr.mxu0 0.0
    %49 = vmatpush1.msra.mxu0 %v46
    %50 = vmatprep.subr.mxu0 0.0
    %51 = vmatpush1.msra.mxu0 0.0
    %52 = vmatprep.subr.mxu0 0.0
    %53 = vmatpush1.msra.mxu0 0.0
    %54 = vmatprep.subr.mxu0 0.0
    %55 = vmatpush1.msra.mxu0 0.0
    %56 = vmatprep.subr.mxu0 0.0
    %57 = vmatpush1.msra.mxu0 0.0
    %58 = vmatprep.subr.mxu0 0.0
    %59 = vmatpush1.msra.mxu0 0.0
    %60 = vmatprep.subr.mxu0 0.0
    %61 = vmatpush1.msra.mxu0 0.0
    %62 = vmatprep.subr.mxu0 0.0
    %63 = vmatpush1.msra.mxu0 0.0
    %64 = vmatprep.subr.mxu0 0.0
    %65 = vmatpush1.msra.mxu0 0.0
    %66 = vmatprep.subr.mxu0 0.0
    %67 = vmatpush1.msra.mxu0 0.0
    %68 = vmatprep.subr.mxu0 0.0
    %69 = vmatpush1.msra.mxu0 0.0
    %70 = vmatprep.subr.mxu0 0.0
    %71 = vmatpush1.msra.mxu0 0.0
    %72 = vmatprep.subr.mxu0 0.0
    %73 = vmatpush1.msra.mxu0 0.0
    %74 = vmatprep.subr.mxu0 0.0
    %75 = vmatpush1.msra.mxu0 0.0
    %76 = vmatprep.subr.mxu0 0.0
    %77 = vmatpush1.msra.mxu0 0.0
    %78 = vmatprep.subr.mxu0 0.0
    %79 = vmatpush1.msra.mxu0 0.0
    %80 = vmatprep.subr.mxu0 0.0
    %81 = vmatpush1.msra.mxu0 0.0
    %82 = vmatprep.subr.mxu0 0.0
    %83 = vmatpush1.msra.mxu0 0.0
    %84 = vmatprep.subr.mxu0 0.0
    %85 = vmatpush1.msra.mxu0 0.0
    %86 = vmatprep.subr.mxu0 0.0
    %87 = vmatpush1.msra.mxu0 0.0
    %88 = vmatprep.subr.mxu0 0.0
    %89 = vmatpush1.msra.mxu0 0.0
    %90 = vmatprep.subr.mxu0 0.0
    %91 = vmatpush1.msra.mxu0 0.0
    %92 = vmatprep.subr.mxu0 0.0
    %93 = vmatpush1.msra.mxu0 0.0
    %94 = vmatprep.subr.mxu0 0.0
    %95 = vmatpush1.msra.mxu0 0.0
    %96 = vmatprep.subr.mxu0 0.0
    %97 = vmatpush1.msra.mxu0 0.0
    %98 = vmatprep.subr.mxu0 0.0
    %99 = vmatpush1.msra.mxu0 0.0
    %100 = vmatprep.subr.mxu0 0.0
    %101 = vmatpush1.msra.mxu0 0.0
    %102 = vmatprep.subr.mxu0 0.0
    %103 = vmatpush1.msra.mxu0 0.0
    %104 = vmatprep.subr.mxu0 0.0
    %105 = vmatpush1.msra.mxu0 0.0
    %106 = vmatprep.subr.mxu0 0.0
    %107 = vmatpush1.msra.mxu0 0.0
    %108 = vmatprep.subr.mxu0 0.0
    %109 = vmatpush1.msra.mxu0 0.0
    %110 = vmatprep.subr.mxu0 0.0
    %111 = vmatpush1.msra.mxu0 0.0
    %112 = vmatprep.mubr.f32.mxu0 0.0
    %113 = vmatmul.mubr.f32.gmra.mrb[0].mxu0 %v33
    %v114 = vpop.f32.mrb[0].mxu0
    %v115 = vadd.f32 0.0, %v114
    %v116 = vpop.f32.mrb[0].mxu0
    %117 = vmatprep.mubr.f32.mxu0 0.0
    %118 = vmatmul.mubr.f32.gmra.mrb[0].mxu0 %v36
    %v119 = vpop.f32.mrb[0].mxu0
    %v120 = vadd.f32 0.0, %v119
    %v121 = vpop.f32.mrb[0].mxu0
    %122 = vmatprep.mubr.f32.mxu0 0.0
    %123 = vmatmul.mubr.f32.gmra.mrb[0].mxu0 %v39
    %v124 = vpop.f32.mrb[0].mxu0
    %v125 = vadd.f32 0.0, %v124
    %v126 = vpop.f32.mrb[0].mxu0
    %127 = vmatprep.mubr.f32.mxu0 0.0
    %128 = vmatmul.mubr.f32.gmra.mrb[0].mxu0 %v42
    %v129 = vpop.f32.mrb[0].mxu0
    %v130 = vadd.f32 0.0, %v129
    %v131 = vpop.f32.mrb[0].mxu0
    %132 = vdwg.mxu0
    %v134 = vsel %vm31, %v21, 0
    %v137 = vsel %vm31, %v22, 0
    %v140 = vsel %vm31, %v23, 0
    %v143 = vsel %vm31, %v24, 0
    %v146 = vsel %vm44, %v25, 0
    %148 = vmatprep.subr.mxu0 0.0
    %149 = vmatpush1.msra.mxu0 %v146
    %150 = vmatprep.subr.mxu0 0.0
    %151 = vmatpush1.msra.mxu0 0.0
    %152 = vmatprep.subr.mxu0 0.0
    %153 = vmatpush1.msra.mxu0 0.0
    %154 = vmatprep.subr.mxu0 0.0
    %155 = vmatpush1.msra.mxu0 0.0
    %156 = vmatprep.subr.mxu0 0.0
    %157 = vmatpush1.msra.mxu0 0.0
    %158 = vmatprep.subr.mxu0 0.0
    %159 = vmatpush1.msra.mxu0 0.0
    %160 = vmatprep.subr.mxu0 0.0
    %161 = vmatpush1.msra.mxu0 0.0
    %162 = vmatprep.subr.mxu0 0.0
    %163 = vmatpush1.msra.mxu0 0.0
    %164 = vmatprep.subr.mxu0 0.0
    %165 = vmatpush1.msra.mxu0 0.0
    %166 = vmatprep.subr.mxu0 0.0
    %167 = vmatpush1.msra.mxu0 0.0
    %168 = vmatprep.subr.mxu0 0.0
    %169 = vmatpush1.msra.mxu0 0.0
    %170 = vmatprep.subr.mxu0 0.0
    %171 = vmatpush1.msra.mxu0 0.0
    %172 = vmatprep.subr.mxu0 0.0
    %173 = vmatpush1.msra.mxu0 0.0
    %174 = vmatprep.subr.mxu0 0.0
    %175 = vmatpush1.msra.mxu0 0.0
    %176 = vmatprep.subr.mxu0 0.0
    %177 = vmatpush1.msra.mxu0 0.0
    %178 = vmatprep.subr.mxu0 0.0
    %179 = vmatpush1.msra.mxu0 0.0
    %180 = vmatprep.subr.mxu0 0.0
    %181 = vmatpush1.msra.mxu0 0.0
    %182 = vmatprep.subr.mxu0 0.0
    %183 = vmatpush1.msra.mxu0 0.0
    %184 = vmatprep.subr.mxu0 0.0
    %185 = vmatpush1.msra.mxu0 0.0
    %186 = vmatprep.subr.mxu0 0.0
    %187 = vmatpush1.msra.mxu0 0.0
    %188 = vmatprep.subr.mxu0 0.0
    %189 = vmatpush1.msra.mxu0 0.0
    %190 = vmatprep.subr.mxu0 0.0
    %191 = vmatpush1.msra.mxu0 0.0
    %192 = vmatprep.subr.mxu0 0.0
    %193 = vmatpush1.msra.mxu0 0.0
    %194 = vmatprep.subr.mxu0 0.0
    %195 = vmatpush1.msra.mxu0 0.0
    %196 = vmatprep.subr.mxu0 0.0
    %197 = vmatpush1.msra.mxu0 0.0
    %198 = vmatprep.subr.mxu0 0.0
    %199 = vmatpush1.msra.mxu0 0.0
    %200 = vmatprep.subr.mxu0 0.0
    %201 = vmatpush1.msra.mxu0 0.0
    %202 = vmatprep.subr.mxu0 0.0
    %203 = vmatpush1.msra.mxu0 0.0
    %204 = vmatprep.subr.mxu0 0.0
    %205 = vmatpush1.msra.mxu0 0.0
    %206 = vmatprep.subr.mxu0 0.0
    %207 = vmatpush1.msra.mxu0 0.0
    %208 = vmatprep.subr.mxu0 0.0
    %209 = vmatpush1.msra.mxu0 0.0
    %210 = vmatprep.subr.mxu0 0.0
    %211 = vmatpush1.msra.mxu0 0.0
    %212 = vmatprep.mubr.f32.mxu0 0.0
    %213 = vmatmul.mubr.f32.gmra.mrb[0].mxu0 %v134
    %v214 = vpop.f32.mrb[0].mxu0
    %v215 = vadd.f32 %v115, %v214
    %v216 = vpop.f32.mrb[0].mxu0
    %217 = vmatprep.mubr.f32.mxu0 0.0
    %218 = vmatmul.mubr.f32.gmra.mrb[0].mxu0 %v137
    %v219 = vpop.f32.mrb[0].mxu0
    %v220 = vadd.f32 %v120, %v219
    %v221 = vpop.f32.mrb[0].mxu0
    %222 = vmatprep.mubr.f32.mxu0 0.0
    %223 = vmatmul.mubr.f32.gmra.mrb[0].mxu0 %v140
    %v224 = vpop.f32.mrb[0].mxu0
    %v225 = vadd.f32 %v125, %v224
    %v226 = vpop.f32.mrb[0].mxu0
    %227 = vmatprep.mubr.f32.mxu0 0.0
    %228 = vmatmul.mubr.f32.gmra.mrb[0].mxu0 %v143
    %v229 = vpop.f32.mrb[0].mxu0
    %v230 = vadd.f32 %v130, %v229
    %v231 = vpop.f32.mrb[0].mxu0
    %232 = vdwg.mxu0
    %v233 = vld [vmem:[%s4] sm:$0x1]
    %v235 = vlaneseq
    %v236 = vshrl.u32 %v235, 7
    %v237 = vsub.s32 0, %v236
    %v238 = vrot.slane %v233, %v237
    %v240 = vadd.f32 %v215, %v238
    %v241 = vadd.f32 %v220, %v238
    %v242 = vadd.f32 %v225, %v238
    %v243 = vadd.f32 %v230, %v238
    %244 = vst [vmem:[#allocation2] sm:$0xff] %v240
    %245 = vst [vmem:[#allocation2 + $0x8] sm:$0xff] %v241
    %246 = vst [vmem:[#allocation2 + $0x10] sm:$0xff] %v242
    %247 = vst [vmem:[#allocation2 + $0x18] sm:$0xff] %v243
    // Predicated region
    $region22: #{tpu_custom_call.1} parent=1 // pred_check
      _
    $region23: #{tpu_custom_call.1} parent=1 // pred_check_branch
      %249 = sbr.rel (0) target = $region25
    $region24: #{tpu_custom_call.1} parent=1 // pred_region
      %s251 = ssub.s32 512, 512
      %252 = vsyncadd [#allocation3], %s251
      %s253 = sshll.u32 [#allocation2], 4
      %s254 = int_to_ptr.vmem [resolvable:$true] %s253
      %259 = dma.vmem_to_hbm [thread:$0]  %s254, 512, %s5, [#allocation3], 128, 128, 8
    $region25: #{tpu_custom_call.1} parent=1 // pred_fallthru
      _
    // Predicated region
    $region26: #{tpu_custom_call.1} parent=1 // pred_check
      _
    $region27: #{tpu_custom_call.1} parent=1 // pred_check_branch
      %261 = sbr.rel (0) target = $region29
    $region28: #{tpu_custom_call.1} parent=1 // pred_region
      %262 = dma.done [#allocation3], 512
    $region29: #{tpu_custom_call.1} parent=1 // pred_fallthru
      _
    %263 = vsyncpa [#allocation3], 1

</llo_original>
